<compile_context>
chip_gen: v7x
topology: tpu7x:2x2x1
jax: 0.10.0
libtpu: 0.0.40
codegen_flags: <defaults>
</compile_context>

<pallas_src>
import functools

import jax
import jax.numpy as jnp
import numpy as np
from jax.experimental import pallas as pl
from jax.experimental.pallas import tpu as pltpu


def _round_up(x, m):
    return ((x + m - 1) // m) * m


# ---------------------------------------------------------------------------
# Pallas kernel: fused multi-feature embedding gather (multi-hot x table, MXU)
# ---------------------------------------------------------------------------
def _fused_embedding_kernel(idx_ref, table_t_ref, out_ref, *, vocab_slices):
    # idx_ref:      (F,  TN) int32 -- RAW per-feature indices (no vocab shift).
    # table_t_ref:  (Dp, Vp) f32   -- transposed block-diagonal fused table;
    #                                 Dp multiple of 8, Vp multiple of 128.
    # out_ref:      (Dp, TN) f32   -- transposed packed embeddings; TN on the
    #                                 lane axis (mult. of 128) -> unmasked vst.
    # vocab_slices: static tuple of (v0, vf_pad) per feature, vf_pad % 8 == 0,
    #               in fused-table row order.
    idx = idx_ref[...]                                     # (F, TN)
    _, tn = idx.shape
    _, vp = table_t_ref.shape
    acc_dtype = table_t_ref.dtype

    # Build the (Vp, TN) multihot from per-feature, sublane-aligned slices:
    # each feature compares only against its own vocab block (O(Vp*TN) VPU
    # work total, and no cross-feature aliasing for out-of-range indices --
    # they simply match nothing / a zero column and gather zeros).
    parts = []
    used = 0
    for j, (_v0, vf_pad) in enumerate(vocab_slices):
        liota = jax.lax.broadcasted_iota(jnp.int32, (vf_pad, tn), 0)
        parts.append((liota == idx[j:j + 1, :]).astype(acc_dtype))
        used += vf_pad
    if vp > used:                                          # 128-rounding tail
        parts.append(jnp.zeros((vp - used, tn), acc_dtype))
    multihot = parts[0] if len(parts) == 1 else jnp.concatenate(parts, axis=0)

    # (Dp, Vp) @ (Vp, TN) on the MXU.  Per-feature vocab/dim blocks are
    # disjoint, so every output element is exactly one table value.
    out_ref[...] = jnp.dot(
        table_t_ref[...], multihot, preferred_element_type=jnp.float32
    ).astype(out_ref.dtype)


@functools.partial(jax.jit, static_argnames=("vocab_slices", "row_tile"))
def _fused_gather(idx, table_t, *, vocab_slices, row_tile):
    """idx: (F, Np) int32 with Np % row_tile == 0; table_t: (Dp, Vp) f32."""
    n_feat, n_pad = idx.shape
    dp, vp = table_t.shape
    kernel = functools.partial(_fused_embedding_kernel, vocab_slices=vocab_slices)

    # Explicit VMEM budget: double-buffered idx/out blocks, (default)
    # double-buffered grid-invariant table, multihot temp (x2 for compare
    # temporaries).  Clamp to 64 MiB so it is valid on v7x as well.
    est = (2 * n_feat * row_tile * 4        # idx blocks
           + 2 * dp * row_tile * 4          # out blocks
           + 2 * dp * vp * 4                # fused table
           + 2 * vp * row_tile * 4)         # multihot + compare temps
    vmem_limit = int(min(64 << 20, max(32 << 20, 2 * est)))

    return pl.pallas_call(
        kernel,
        out_shape=jax.ShapeDtypeStruct((dp, n_pad), table_t.dtype),
        grid_spec=pltpu.PrefetchScalarGridSpec(
            num_scalar_prefetch=0,
            grid=(n_pad // row_tile,),
            in_specs=[
                # lane-dense index slab: (F, row_tile) per grid step
                pl.BlockSpec((n_feat, row_tile), lambda i: (0, i)),
                # full fused table resident in VMEM (constant index_map)
                pl.BlockSpec((dp, vp), lambda i: (0, 0)),
            ],
            out_specs=pl.BlockSpec((dp, row_tile), lambda i: (0, i)),
        ),
        compiler_params=pltpu.CompilerParams(
            dimension_semantics=("parallel",),
            vmem_limit_bytes=vmem_limit,
        ),
    )(idx, table_t)


# ---------------------------------------------------------------------------
# TemporalVariableEncoder (forward semantics of the PyTorch module)
# ---------------------------------------------------------------------------
class TemporalVariableEncoderPallas:
    def __init__(
        self,
        temporal_features,
        categorical_features,
        embedding_sizes,
        embedding_size=8,
        embedding_paddings=(),
        key=None,
        row_tile=1024,
    ):
        if key is None:
            key = jax.random.PRNGKey(0)
        self.temporal_categorical = [
            f for f in temporal_features if f in categorical_features
        ]
        self.temporal_reals = [
            f for f in temporal_features if f not in categorical_features
        ]
        self.row_tile = max(128, (row_tile // 128) * 128)

        # MultiEmbedding: one nn.Embedding per categorical feature, dim clamped
        # by max_embedding_size (= embedding_size).  padding_idx=0 rows are 0.
        self.cat_names = list(embedding_sizes.keys())
        self.tables = {}
        self.embedding_dims = {}
        for name in self.cat_names:
            n_cat, dim = embedding_sizes[name]
            dim = min(dim, embedding_size)
            self.embedding_dims[name] = dim
            key, sub = jax.random.split(key)
            table = jax.random.normal(sub, (n_cat, dim), dtype=jnp.float32)
            if name in embedding_paddings:
                table = table.at[0].set(0.0)  # emulate padding_idx=0
            self.tables[name] = table

        # Fused, transposed, block-diagonal table (parameter transform, done
        # once).  Per-feature vocab blocks and dim blocks are padded to
        # multiples of 8 (sublane-aligned); fused vocab axis padded to 128.
        self.col_offsets = {}
        vocab_slices = []
        v_off, d_off = 0, 0
        for name in self.cat_names:
            n_cat = self.tables[name].shape[0]
            dim = self.embedding_dims[name]
            vf_pad = _round_up(max(n_cat, 1), 8)
            d_pad = _round_up(max(dim, 1), 8)
            vocab_slices.append((v_off, vf_pad))
            self.col_offsets[name] = d_off
            v_off += vf_pad
            d_off += d_pad
        self.vocab_slices = tuple(vocab_slices)

        if self.cat_names:
            vp = max(128, _round_up(v_off, 128))   # lane axis of the table
            dp = max(8, _round_up(d_off, 8))       # sublane axis (= 8*F here)
            fused = jnp.zeros((dp, vp), jnp.float32)
            for name, (v0, _) in zip(self.cat_names, self.vocab_slices):
                t = self.tables[name]
                c0 = self.col_offsets[name]
                fused = fused.at[c0:c0 + t.shape[1], v0:v0 + t.shape[0]].set(t.T)
            self.fused_table_t = fused
        else:
            self.fused_table_t = None

    def __call__(self, x):
        input_vectors = {}

        # -- categorical temporal features: one fused Pallas gather ----------
        if self.cat_names:
            batch_shape = x[self.cat_names[0]].shape          # e.g. (B, T)
            n = int(np.prod(batch_shape)) if batch_shape else 1

            # lane-dense (F, N) slab of RAW int32 indices
            rows = [x[name].reshape(-1).astype(jnp.int32) for name in self.cat_names]
            idx = jnp.stack(rows, axis=0)                     # (F, N)

            dp, vp = self.fused_table_t.shape

            # VMEM-aware tile cap: keep the (Vp, row_tile) f32 multihot temp
            # under ~8 MiB so the whole working set fits v7x's 64 MiB VMEM.
            max_tile = max(128, (((8 << 20) // (vp * 4)) // 128) * 128)
            base_tile = min(self.row_tile, max_tile)

            n_pad = _round_up(n, 128)
            if n_pad > 256:
                # force >= 2 grid steps so the "parallel" axis can shard
                # across both TensorCores on v7x; cap at base_tile for large N
                row_tile = min(base_tile, _round_up(n_pad // 2, 128))
                n_pad = _round_up(n, row_tile)
            else:
                row_tile = n_pad                              # single tiny step

            idx = jnp.pad(idx, ((0, 0), (0, n_pad - n)))      # pad cols sliced off

            out_t = _fused_gather(idx, self.fused_table_t,
                                  vocab_slices=self.vocab_slices,
                                  row_tile=row_tile)          # (Dp, Np)

            # ONE wide transpose, then cheap per-feature lane slices.
            out_nd = out_t.T[:n]                              # (N, Dp)
            for name in self.cat_names:
                c0 = self.col_offsets[name]
                d = self.embedding_dims[name]
                input_vectors[name] = out_nd[:, c0:c0 + d].reshape(*batch_shape, d)

        # -- continuous temporal features: ensure trailing feature dim of 1 --
        for name in self.temporal_reals:
            v = x[name]
            input_vectors[name] = v if v.ndim == 3 else v[..., None]
        return input_vectors


# ---------------------------------------------------------------------------
# Demo / self-check
# ---------------------------------------------------------------------------
if __name__ == "__main__":
    B, T = 2, 8
    temporal_features = ["cat_a", "cat_b", "real_1", "real_2"]
    categorical_features = ["cat_a", "cat_b"]
    embedding_sizes = {"cat_a": (11, 8), "cat_b": (7, 16)}  # 16 clamps to 8
    embedding_paddings = ["cat_a"]

    key = jax.random.PRNGKey(0)
    k_enc, k_a, k_b, k_r1, k_r2, k_a2, k_b2, k_r3, k_r4 = jax.random.split(key, 9)

    encoder = TemporalVariableEncoderPallas(
        temporal_features=temporal_features,
        categorical_features=categorical_features,
        embedding_sizes=embedding_sizes,
        embedding_size=8,
        embedding_paddings=embedding_paddings,
        key=k_enc,
    )

    x = {
        "cat_a": jax.random.randint(k_a, (B, T), 0, 11, dtype=jnp.int32),
        "cat_b": jax.random.randint(k_b, (B, T), 0, 7, dtype=jnp.int32),
        "real_1": jax.random.normal(k_r1, (B, T), dtype=jnp.float32),
        "real_2": jax.random.normal(k_r2, (B, T), dtype=jnp.float32),
    }
    # exercise padding_idx=0 on cat_a
    x["cat_a"] = x["cat_a"].at[0, 0].set(0)

    out = encoder(x)
    out = jax.block_until_ready(out)

    # sanity: shapes + exact match against pure-JAX gather reference
    assert out["cat_a"].shape == (B, T, 8)
    assert out["cat_b"].shape == (B, T, 8)
    assert out["real_1"].shape == (B, T, 1)
    assert out["real_2"].shape == (B, T, 1)
    for name in ["cat_a", "cat_b"]:
        ref = jnp.take(encoder.tables[name], x[name], axis=0)
        assert jnp.allclose(out[name], ref, atol=0, rtol=0), name
    assert jnp.allclose(out["cat_a"][0, 0], 0.0)           # padding row is zero
    assert jnp.allclose(out["real_1"], x["real_1"][..., None])

    # second check: larger B*T exercises the multi-step (>=2 parallel) grid path
    B2, T2 = 4, 300                                          # N=1200 -> 2 tiles
    x2 = {
        "cat_a": jax.random.randint(k_a2, (B2, T2), 0, 11, dtype=jnp.int32),
        "cat_b": jax.random.randint(k_b2, (B2, T2), 0, 7, dtype=jnp.int32),
        "real_1": jax.random.normal(k_r3, (B2, T2), dtype=jnp.float32),
        "real_2": jax.random.normal(k_r4, (B2, T2), dtype=jnp.float32),
    }
    out2 = jax.block_until_ready(encoder(x2))
    for name in ["cat_a", "cat_b"]:
        ref2 = jnp.take(encoder.tables[name], x2[name], axis=0)
        assert out2[name].shape == (B2, T2, 8)
        assert jnp.allclose(out2[name], ref2, atol=0, rtol=0), name

    print("KERNEL_OK")
</pallas_src>

<mosaic_0001>
module attributes {stable_mosaic.version = 11 : i64} {
  func.func @_fused_embedding_kernel(%arg0: i32, %arg1: memref<2x128xi32, #tpu.memory_space<vmem>>, %arg2: memref<16x128xf32, #tpu.memory_space<vmem>>, %arg3: memref<16x128xf32, #tpu.memory_space<vmem>>) attributes {dimension_semantics = [#tpu.dimension_semantics<parallel>], iteration_bounds = array<i64: 1>, scalar_prefetch = 0 : i64, scratch_operands = 0 : i64, tpu.core_type = #tpu.core_type<tc>, window_params = [{transform_indices = @transform_0, window_bounds = array<i64: 2, 128>}, {pipeline_mode = #tpu.pipeline_mode<synchronous>, transform_indices = @transform_1, window_bounds = array<i64: 16, 128>}, {transform_indices = @transform_2, window_bounds = array<i64: 16, 128>}]} {
    %c0 = arith.constant 0 : index
    %c0_0 = arith.constant 0 : index
    %0 = vector.load %arg1[%c0, %c0_0] : memref<2x128xi32, #tpu.memory_space<vmem>>, vector<2x128xi32>
    %1 = tpu.iota {dimensions = array<i32: 0>} : vector<16x128xi32>
    %2 = vector.extract_strided_slice %0 {offsets = [0, 0], sizes = [1, 128], strides = [1, 1]} : vector<2x128xi32> to vector<1x128xi32>
    %3 = vector.broadcast %2 : vector<1x128xi32> to vector<16x128xi32>
    %4 = arith.cmpi eq, %1, %3 : vector<16x128xi32>
    %5 = arith.extui %4 : vector<16x128xi1> to vector<16x128xi32>
    %6 = arith.sitofp %5 : vector<16x128xi32> to vector<16x128xf32>
    %7 = tpu.iota {dimensions = array<i32: 0>} : vector<8x128xi32>
    %8 = vector.extract_strided_slice %0 {offsets = [1, 0], sizes = [1, 128], strides = [1, 1]} : vector<2x128xi32> to vector<1x128xi32>
    %9 = vector.broadcast %8 : vector<1x128xi32> to vector<8x128xi32>
    %10 = arith.cmpi eq, %7, %9 : vector<8x128xi32>
    %11 = arith.extui %10 : vector<8x128xi1> to vector<8x128xi32>
    %12 = arith.sitofp %11 : vector<8x128xi32> to vector<8x128xf32>
    %cst = arith.constant 0.000000e+00 : f32
    %13 = vector.broadcast %cst : f32 to vector<104x128xf32>
    %14 = tpu.concatenate %6, %12, %13 in 0 : vector<16x128xf32>, vector<8x128xf32>, vector<104x128xf32> -> vector<128x128xf32>
    %c0_1 = arith.constant 0 : index
    %c0_2 = arith.constant 0 : index
    %15 = vector.load %arg2[%c0_1, %c0_2] : memref<16x128xf32, #tpu.memory_space<vmem>>, vector<16x128xf32>
    %cst_3 = arith.constant dense<0.000000e+00> : vector<16x128xf32>
    %16 = tpu.matmul %15, %14, %cst_3 {dimension_numbers = #tpu.dot_dimension_numbers<[1], [0], [0], [1], [0, 0, 1, 1], [], []>} : vector<16x128xf32>, vector<128x128xf32>, vector<16x128xf32> -> vector<16x128xf32>
    %c0_4 = arith.constant 0 : index
    %c0_5 = arith.constant 0 : index
    %17 = vector.load %arg3[%c0_4, %c0_5] : memref<16x128xf32, #tpu.memory_space<vmem>>, vector<16x128xf32>
    tpu.vector_store %arg3[%c0_4, %c0_5], %16 {strides = array<i32>} : memref<16x128xf32, #tpu.memory_space<vmem>>, vector<16x128xf32>,
    return
  }
  func.func @transform_0(%arg0: i32) -> (i32, i32) {
    %c0_i32 = arith.constant 0 : i32
    %c0_i32_0 = arith.constant 0 : i32
    return %c0_i32, %arg0 : i32, i32
  }
  func.func @transform_1(%arg0: i32) -> (i32, i32) {
    %c0_i32 = arith.constant 0 : i32
    %c0_i32_0 = arith.constant 0 : i32
    %c0_i32_1 = arith.constant 0 : i32
    return %c0_i32, %c0_i32_0 : i32, i32
  }
  func.func @transform_2(%arg0: i32) -> (i32, i32) {
    %c0_i32 = arith.constant 0 : i32
    %c0_i32_0 = arith.constant 0 : i32
    return %c0_i32, %arg0 : i32, i32
  }
}

</mosaic_0001>

<llo_original>
// kernel: _fused_gather.1
$region0: #{_fused_gather.1}
  #allocation0 [shape = 'u32[]', space=smem, size = 0x4, offset = 0x4, fixed_abs, tag = 'smem constant byte address 0x4 - core index']
  #allocation1 [shape = 'u32[144,128]{1,0:T(1,128)}', space=vmem, size = 0x12000, scoped, tag = 'internal scratch']
  %s0 = inlined_call_operand.hbm [shape: s32[2,128], index: 0, kind: input, shape index: {}]
  %s1 = inlined_call_operand.hbm [shape: f32[16,128], index: 1, kind: input, shape index: {}]
  %s2 = inlined_call_operand.hbm [shape: f32[16,128], index: 2, kind: output, shape index: {}]
  %s3 = sld [smem:[#allocation0]]
  $region26: #{_fused_gather.1} parent=0
    _
  %s5 = ssub.s32 1, %s3
  %s6 = scalar_select 0, %s5, %s3
  $region1: #{_fused_gather.1} parent=0
    #allocation2 [shape = 'u8[1024]{0}', space=vmem, size = 0x400, scoped, tag = 'input window, operand 0, single buffered']
    #allocation3 [shape = 's32[1]{0}', space=sflag, size = 0x4, scoped, tag = 'scoped memory for _fused_gather.1']
    #allocation4 [shape = 's32[1]{0}', space=sflag, size = 0x4, scoped, tag = 'scoped memory for _fused_gather.1']
    #allocation5 [shape = 'u8[8192]{0}', space=vmem, size = 0x2000, scoped, tag = 'input window, operand 1, single buffered']
    #allocation6 [shape = 's32[1]{0}', space=sflag, size = 0x4, scoped, tag = 'scoped memory for _fused_gather.1']
    #allocation7 [shape = 'u8[8192]{0}', space=vmem, size = 0x2000, scoped, tag = 'output window, operand 0, single buffered']
    %7 = vsyncpa [#allocation3], 0
    %8 = vsyncpa [#allocation6], 0
    %9 = vsyncpa [#allocation4], 0
    // Predicated region
    $region2: #{_fused_gather.1} parent=1 // pred_check
      _
    $region3: #{_fused_gather.1} parent=1 // pred_check_branch
      %11 = sbr.rel (0) target = $region5
    $region4: #{_fused_gather.1} parent=1 // pred_region
      %s13 = ssub.s32 32, 32
      %14 = vsyncadd [#allocation3], %s13
      %s16 = sshll.u32 [#allocation2], 4
      %s17 = int_to_ptr.vmem [resolvable:$true] %s16
      %19 = dma.hbm_to_vmem [thread:$0]  %s0, 32, %s17, [#allocation3]
    $region5: #{_fused_gather.1} parent=1 // pred_fallthru
      _
    // Predicated region
    $region6: #{_fused_gather.1} parent=1 // pred_check
      _
    $region7: #{_fused_gather.1} parent=1 // pred_check_branch
      %21 = sbr.rel (0) target = $region9
    $region8: #{_fused_gather.1} parent=1 // pred_region
      %s23 = ssub.s32 256, 256
      %24 = vsyncadd [#allocation6], %s23
      %s25 = sshll.u32 [#allocation5], 4
      %s26 = int_to_ptr.vmem [resolvable:$true] %s25
      %31 = dma.hbm_to_vmem [thread:$0]  %s1, 256, %s26, [#allocation6], 128, 128, 8
    $region9: #{_fused_gather.1} parent=1 // pred_fallthru
      _
    // Predicated region
    $region10: #{_fused_gather.1} parent=1 // pred_check
      _
    $region11: #{_fused_gather.1} parent=1 // pred_check_branch
      %33 = sbr.rel (0) target = $region13
    $region12: #{_fused_gather.1} parent=1 // pred_region
      %34 = dma.done [#allocation3], 32
    $region13: #{_fused_gather.1} parent=1 // pred_fallthru
      _
    // Predicated region
    $region14: #{_fused_gather.1} parent=1 // pred_check
      _
    $region15: #{_fused_gather.1} parent=1 // pred_check_branch
      %36 = sbr.rel (0) target = $region17
    $region16: #{_fused_gather.1} parent=1 // pred_region
      %37 = dma.done [#allocation6], 256
    $region17: #{_fused_gather.1} parent=1 // pred_fallthru
      _
    %v38 = vld [vmem:[#allocation2] sm:$0x3]
    %v39 = vlaneseq
    %v40 = vshrl.u32 %v39, 7
    %v41 = vadd.s32 %v40, 8
    %v42 = vlaneseq
    %v43 = vshrl.u32 %v42, 7
    %v44 = vsub.s32 0, %v43
    %v45 = vrot.slane %v38, %v44
    %vm46 = vcmp.eq.s32.totalorder %v40, %v45
    %vm47 = vcmp.eq.s32.totalorder %v41, %v45
    %v48 = vsel %vm46, 1, 0
    %v49 = vsel %vm47, 1, 0
    %v50 = vcvt.s32.f32 %v48
    %v51 = vcvt.s32.f32 %v49
    %v52 = vlaneseq
    %v53 = vshrl.u32 %v52, 7
    %v54 = vsub.s32 1, %v53
    %v55 = vrot.slane %v38, %v54
    %vm56 = vcmp.eq.s32.totalorder %v40, %v55
    %v57 = vsel %vm56, 1, 0
    %v58 = vcvt.s32.f32 %v57
    %v59 = vld [vmem:[#allocation5] sm:$0xff]
    %v60 = vld [vmem:[#allocation5 + $0x8] sm:$0xff]
    %61 = vmatprep.subr.mxu0 0.0
    %62 = vmatpush1.msra.mxu0 %v50
    %63 = vmatprep.subr.mxu0 0.0
    %64 = vmatpush1.msra.mxu0 %v51
    %65 = vmatprep.subr.mxu0 0.0
    %66 = vmatpush1.msra.mxu0 %v58
    %67 = vmatprep.subr.mxu0 0.0
    %68 = vmatpush1.msra.mxu0 0.0
    %69 = vmatprep.subr.mxu0 0.0
    %70 = vmatpush1.msra.mxu0 0.0
    %71 = vmatprep.subr.mxu0 0.0
    %72 = vmatpush1.msra.mxu0 0.0
    %73 = vmatprep.subr.mxu0 0.0
    %74 = vmatpush1.msra.mxu0 0.0
    %75 = vmatprep.subr.mxu0 0.0
    %76 = vmatpush1.msra.mxu0 0.0
    %77 = vmatprep.subr.mxu0 0.0
    %78 = vmatpush1.msra.mxu0 0.0
    %79 = vmatprep.subr.mxu0 0.0
    %80 = vmatpush1.msra.mxu0 0.0
    %81 = vmatprep.subr.mxu0 0.0
    %82 = vmatpush1.msra.mxu0 0.0
    %83 = vmatprep.subr.mxu0 0.0
    %84 = vmatpush1.msra.mxu0 0.0
    %85 = vmatprep.subr.mxu0 0.0
    %86 = vmatpush1.msra.mxu0 0.0
    %87 = vmatprep.subr.mxu0 0.0
    %88 = vmatpush1.msra.mxu0 0.0
    %89 = vmatprep.subr.mxu0 0.0
    %90 = vmatpush1.msra.mxu0 0.0
    %91 = vmatprep.subr.mxu0 0.0
    %92 = vmatpush1.msra.mxu0 0.0
    %93 = vmatprep.subr.mxu0 0.0
    %94 = vmatpush1.msra.mxu0 0.0
    %95 = vmatprep.subr.mxu0 0.0
    %96 = vmatpush1.msra.mxu0 0.0
    %97 = vmatprep.subr.mxu0 0.0
    %98 = vmatpush1.msra.mxu0 0.0
    %99 = vmatprep.subr.mxu0 0.0
    %100 = vmatpush1.msra.mxu0 0.0
    %101 = vmatprep.subr.mxu0 0.0
    %102 = vmatpush1.msra.mxu0 0.0
    %103 = vmatprep.subr.mxu0 0.0
    %104 = vmatpush1.msra.mxu0 0.0
    %105 = vmatprep.subr.mxu0 0.0
    %106 = vmatpush1.msra.mxu0 0.0
    %107 = vmatprep.subr.mxu0 0.0
    %108 = vmatpush1.msra.mxu0 0.0
    %109 = vmatprep.subr.mxu0 0.0
    %110 = vmatpush1.msra.mxu0 0.0
    %111 = vmatprep.subr.mxu0 0.0
    %112 = vmatpush1.msra.mxu0 0.0
    %113 = vmatprep.subr.mxu0 0.0
    %114 = vmatpush1.msra.mxu0 0.0
    %115 = vmatprep.subr.mxu0 0.0
    %116 = vmatpush1.msra.mxu0 0.0
    %117 = vmatprep.subr.mxu0 0.0
    %118 = vmatpush1.msra.mxu0 0.0
    %119 = vmatprep.subr.mxu0 0.0
    %120 = vmatpush1.msra.mxu0 0.0
    %121 = vmatprep.subr.mxu0 0.0
    %122 = vmatpush1.msra.mxu0 0.0
    %123 = vmatprep.subr.mxu0 0.0
    %124 = vmatpush1.msra.mxu0 0.0
    %125 = vmatprep.mubr.f32.mxu0 0.0
    %126 = vmatmul.mubr.f32.gmra.mrb[0].mxu0 %v59
    %v127 = vpop.f32.mrb[0].mxu0
    %v128 = vadd.f32 0.0, %v127
    %v129 = vpop.f32.mrb[0].mxu0
    %130 = vmatprep.mubr.f32.mxu0 0.0
    %131 = vmatmul.mubr.f32.gmra.mrb[0].mxu0 %v60
    %v132 = vpop.f32.mrb[0].mxu0
    %v133 = vadd.f32 0.0, %v132
    %v134 = vpop.f32.mrb[0].mxu0
    %135 = vdwg.mxu0
    %136 = vst [vmem:[#allocation7] sm:$0xff] %v128
    %137 = vst [vmem:[#allocation7 + $0x8] sm:$0xff] %v133
    // Predicated region
    $region18: #{_fused_gather.1} parent=1 // pred_check
      _
    $region19: #{_fused_gather.1} parent=1 // pred_check_branch
      %139 = sbr.rel (0) target = $region21
    $region20: #{_fused_gather.1} parent=1 // pred_region
      %s141 = ssub.s32 256, 256
      %142 = vsyncadd [#allocation4], %s141
      %s143 = sshll.u32 [#allocation7], 4
      %s144 = int_to_ptr.vmem [resolvable:$true] %s143
      %149 = dma.vmem_to_hbm [thread:$0]  %s144, 256, %s2, [#allocation4], 128, 128, 8
    $region21: #{_fused_gather.1} parent=1 // pred_fallthru
      _
    // Predicated region
    $region22: #{_fused_gather.1} parent=1 // pred_check
      _
    $region23: #{_fused_gather.1} parent=1 // pred_check_branch
      %151 = sbr.rel (0) target = $region25
    $region24: #{_fused_gather.1} parent=1 // pred_region
      %152 = dma.done [#allocation4], 256
    $region25: #{_fused_gather.1} parent=1 // pred_fallthru
      _
    %153 = vsyncpa [#allocation3], 1
    %154 = vsyncpa [#allocation6], 1
    %155 = vsyncpa [#allocation4], 1

</llo_original>
